<compile_context>
chip_gen: v7x
topology: tpu7x:2x2x1
jax: 0.10.0
libtpu: 0.0.40
codegen_flags: <defaults>
</compile_context>

<pallas_src>
import functools

import jax
import jax.numpy as jnp
from jax.experimental import pallas as pl
from jax.experimental.pallas import tpu as pltpu


def _fused_mlp_kernel(*refs, num_layers: int):
    """Fused MLP body: x_ref, (w0, b0, w1, b1, ...), o_ref.

    x_ref: (TM, K0), w_i: (K_i, N_i), b_i: (1, N_i), o_ref: (TM, N_last).
    Hidden activations live entirely in f32 vregs; only the final (lane-sparse
    but tiny) output tile is stored.
    """
    x_ref = refs[0]
    o_ref = refs[-1]
    wb = refs[1:-1]

    h = x_ref[...].astype(jnp.float32)
    for i in range(num_layers):
        w = wb[2 * i][...].astype(jnp.float32)
        b = wb[2 * i + 1][...].astype(jnp.float32)
        # MXU matmul with f32 accumulate; bias add on VPU, tanh on EUP —
        # both have slack under the MXU, so this epilogue is effectively free.
        h = jnp.dot(h, w, preferred_element_type=jnp.float32) + b
        if i < num_layers - 1:
            h = jnp.tanh(h)
    o_ref[...] = h.astype(o_ref.dtype)


def mlp_forward(params, x, output_squeeze=False, block_m=512):
    """Forward pass identical to MLP.forward: tanh on hidden layers, identity
    on the last layer, optional torch-style .squeeze() on the result.

    Single fused Pallas kernel; batch tiled with `block_m` rows per grid step
    (multiple of 8), weights/biases VMEM-resident across the whole grid.
    """
    num_layers = len(params)
    M, K0 = x.shape
    n_out = params[-1][0].shape[1]

    # Batch tile: full extent for small batches, otherwise block_m-row tiles
    # (block_m is a multiple of 8 -> satisfies the (8,128) sublane rule and
    # keeps per-step VMEM use bounded on v7x's smaller VMEM).
    if M <= block_m:
        tm = M
        m_pad = M
    else:
        tm = block_m
        m_pad = pl.cdiv(M, tm) * tm

    x_p = x if m_pad == M else jnp.pad(x, ((0, m_pad - M), (0, 0)))

    wb_inputs = []
    wb_specs = []
    flops = 0
    transcendentals = 0
    bytes_accessed = x.size * x.dtype.itemsize + M * n_out * x.dtype.itemsize
    for i, (w, b) in enumerate(params):
        k, n = w.shape
        wb_inputs += [w, b.reshape(1, n)]
        # Weights / biases: same block every grid step -> stay resident in VMEM.
        wb_specs += [
            pl.BlockSpec((k, n), lambda g: (0, 0)),
            pl.BlockSpec((1, n), lambda g: (0, 0)),
        ]
        flops += 2 * M * k * n
        if i < num_layers - 1:
            transcendentals += M * n
        bytes_accessed += (w.size + b.size) * w.dtype.itemsize

    kernel = functools.partial(_fused_mlp_kernel, num_layers=num_layers)

    out = pl.pallas_call(
        kernel,
        out_shape=jax.ShapeDtypeStruct((m_pad, n_out), x.dtype),
        grid=(m_pad // tm,),
        in_specs=[pl.BlockSpec((tm, K0), lambda g: (g, 0))] + wb_specs,
        out_specs=pl.BlockSpec((tm, n_out), lambda g: (g, 0)),
        compiler_params=pltpu.CompilerParams(
            dimension_semantics=("parallel",),          # megacore split on v7x
            vmem_limit_bytes=64 * 1024 * 1024,
        ),
        cost_estimate=pl.CostEstimate(
            flops=flops,
            transcendentals=transcendentals,
            bytes_accessed=bytes_accessed,
        ),
    )(x_p, *wb_inputs)

    out = out[:M]
    if output_squeeze:
        # Matches torch's x.squeeze(): drops ALL size-1 dims (incl. batch=1).
        out = jnp.squeeze(out)
    return out


def init_mlp_params(key, layer_sizes):
    """Params mirroring nn.Linear shapes; biases zeroed (nn.init.zeros_)."""
    params = []
    for fan_in, fan_out in zip(layer_sizes[:-1], layer_sizes[1:]):
        key, sub = jax.random.split(key)
        bound = 1.0 / jnp.sqrt(jnp.float32(fan_in))
        w = jax.random.uniform(
            sub, (fan_in, fan_out), dtype=jnp.float32, minval=-bound, maxval=bound
        )
        b = jnp.zeros((fan_out,), dtype=jnp.float32)
        params.append((w, b))
    return params


def _reference(params, x):
    ref = x
    for i, (w, b) in enumerate(params):
        ref = ref @ w + b
        if i < len(params) - 1:
            ref = jnp.tanh(ref)
    return ref


if __name__ == "__main__":
    # Shapes consistent with a typical PPO MLP: obs_dim=16 -> 32 -> 32 -> 4
    layer_sizes = [16, 32, 32, 4]

    key = jax.random.PRNGKey(0)
    params = init_mlp_params(key, layer_sizes)

    # --- small batch (single full-extent tile) ---
    batch = 2
    key, xkey = jax.random.split(key)
    x = jax.random.normal(xkey, (batch, layer_sizes[0]), dtype=jnp.float32)

    out = mlp_forward(params, x, output_squeeze=False)
    out = jax.block_until_ready(out)
    assert out.shape == (batch, layer_sizes[-1])
    assert jnp.allclose(out, _reference(params, x), atol=1e-5, rtol=1e-5)

    # --- larger batch: exercises the tiled / pipelined / parallel grid path ---
    batch2 = 384
    key, xkey2 = jax.random.split(key)
    x2 = jax.random.normal(xkey2, (batch2, layer_sizes[0]), dtype=jnp.float32)
    out2 = jax.block_until_ready(mlp_forward(params, x2, block_m=128))
    assert out2.shape == (batch2, layer_sizes[-1])
    assert jnp.allclose(out2, _reference(params, x2), atol=1e-5, rtol=1e-5)

    print("KERNEL_OK")
</pallas_src>

<mosaic_0001>
module attributes {stable_mosaic.version = 11 : i64} {
  func.func @_fused_mlp_kernel(%arg0: i32, %arg1: memref<2x16xf32, #tpu.memory_space<vmem>>, %arg2: memref<16x32xf32, #tpu.memory_space<vmem>>, %arg3: memref<1x32xf32, #tpu.memory_space<vmem>>, %arg4: memref<32x32xf32, #tpu.memory_space<vmem>>, %arg5: memref<1x32xf32, #tpu.memory_space<vmem>>, %arg6: memref<32x4xf32, #tpu.memory_space<vmem>>, %arg7: memref<1x4xf32, #tpu.memory_space<vmem>>, %arg8: memref<2x4xf32, #tpu.memory_space<vmem>>) attributes {dimension_semantics = [#tpu.dimension_semantics<parallel>], iteration_bounds = array<i64: 1>, scalar_prefetch = 0 : i64, scratch_operands = 0 : i64, tpu.core_type = #tpu.core_type<tc>, window_params = [{transform_indices = @transform_0, window_bounds = array<i64: 2, 16>}, {pipeline_mode = #tpu.pipeline_mode<synchronous>, transform_indices = @transform_1, window_bounds = array<i64: 16, 32>}, {pipeline_mode = #tpu.pipeline_mode<synchronous>, transform_indices = @transform_2, window_bounds = array<i64: 1, 32>}, {pipeline_mode = #tpu.pipeline_mode<synchronous>, transform_indices = @transform_3, window_bounds = array<i64: 32, 32>}, {pipeline_mode = #tpu.pipeline_mode<synchronous>, transform_indices = @transform_4, window_bounds = array<i64: 1, 32>}, {pipeline_mode = #tpu.pipeline_mode<synchronous>, transform_indices = @transform_5, window_bounds = array<i64: 32, 4>}, {pipeline_mode = #tpu.pipeline_mode<synchronous>, transform_indices = @transform_6, window_bounds = array<i64: 1, 4>}, {transform_indices = @transform_7, window_bounds = array<i64: 2, 4>}]} {
    %c0 = arith.constant 0 : index
    %c0_0 = arith.constant 0 : index
    %0 = vector.load %arg1[%c0, %c0_0] : memref<2x16xf32, #tpu.memory_space<vmem>>, vector<2x16xf32>
    %c0_1 = arith.constant 0 : index
    %c0_2 = arith.constant 0 : index
    %1 = vector.load %arg2[%c0_1, %c0_2] : memref<16x32xf32, #tpu.memory_space<vmem>>, vector<16x32xf32>
    %c0_3 = arith.constant 0 : index
    %c0_4 = arith.constant 0 : index
    %2 = vector.load %arg3[%c0_3, %c0_4] : memref<1x32xf32, #tpu.memory_space<vmem>>, vector<1x32xf32>
    %cst = arith.constant dense<0.000000e+00> : vector<2x32xf32>
    %3 = tpu.matmul %0, %1, %cst {dimension_numbers = #tpu.dot_dimension_numbers<[1], [0], [0], [1], [0, 0, 1, 1], [], []>} : vector<2x16xf32>, vector<16x32xf32>, vector<2x32xf32> -> vector<2x32xf32>
    %4 = vector.broadcast %2 : vector<1x32xf32> to vector<2x32xf32>
    %5 = arith.addf %3, %4 : vector<2x32xf32>
    %6 = math.tanh %5 : vector<2x32xf32>
    %c0_5 = arith.constant 0 : index
    %c0_6 = arith.constant 0 : index
    %7 = vector.load %arg4[%c0_5, %c0_6] : memref<32x32xf32, #tpu.memory_space<vmem>>, vector<32x32xf32>
    %c0_7 = arith.constant 0 : index
    %c0_8 = arith.constant 0 : index
    %8 = vector.load %arg5[%c0_7, %c0_8] : memref<1x32xf32, #tpu.memory_space<vmem>>, vector<1x32xf32>
    %cst_9 = arith.constant dense<0.000000e+00> : vector<2x32xf32>
    %9 = tpu.matmul %6, %7, %cst_9 {dimension_numbers = #tpu.dot_dimension_numbers<[1], [0], [0], [1], [0, 0, 1, 1], [], []>} : vector<2x32xf32>, vector<32x32xf32>, vector<2x32xf32> -> vector<2x32xf32>
    %10 = vector.broadcast %8 : vector<1x32xf32> to vector<2x32xf32>
    %11 = arith.addf %9, %10 : vector<2x32xf32>
    %12 = math.tanh %11 : vector<2x32xf32>
    %c0_10 = arith.constant 0 : index
    %c0_11 = arith.constant 0 : index
    %13 = vector.load %arg6[%c0_10, %c0_11] : memref<32x4xf32, #tpu.memory_space<vmem>>, vector<32x4xf32>
    %c0_12 = arith.constant 0 : index
    %c0_13 = arith.constant 0 : index
    %14 = vector.load %arg7[%c0_12, %c0_13] : memref<1x4xf32, #tpu.memory_space<vmem>>, vector<1x4xf32>
    %cst_14 = arith.constant dense<0.000000e+00> : vector<2x4xf32>
    %15 = tpu.matmul %12, %13, %cst_14 {dimension_numbers = #tpu.dot_dimension_numbers<[1], [0], [0], [1], [0, 0, 1, 1], [], []>} : vector<2x32xf32>, vector<32x4xf32>, vector<2x4xf32> -> vector<2x4xf32>
    %16 = vector.broadcast %14 : vector<1x4xf32> to vector<2x4xf32>
    %17 = arith.addf %15, %16 : vector<2x4xf32>
    %c0_15 = arith.constant 0 : index
    %c0_16 = arith.constant 0 : index
    %18 = vector.load %arg8[%c0_15, %c0_16] : memref<2x4xf32, #tpu.memory_space<vmem>>, vector<2x4xf32>
    tpu.vector_store %arg8[%c0_15, %c0_16], %17 {strides = array<i32>} : memref<2x4xf32, #tpu.memory_space<vmem>>, vector<2x4xf32>,
    return
  }
  func.func @transform_0(%arg0: i32) -> (i32, i32) {
    %c0_i32 = arith.constant 0 : i32
    %c0_i32_0 = arith.constant 0 : i32
    return %arg0, %c0_i32 : i32, i32
  }
  func.func @transform_1(%arg0: i32) -> (i32, i32) {
    %c0_i32 = arith.constant 0 : i32
    %c0_i32_0 = arith.constant 0 : i32
    %c0_i32_1 = arith.constant 0 : i32
    return %c0_i32, %c0_i32_0 : i32, i32
  }
  func.func @transform_2(%arg0: i32) -> (i32, i32) {
    %c0_i32 = arith.constant 0 : i32
    %c0_i32_0 = arith.constant 0 : i32
    %c0_i32_1 = arith.constant 0 : i32
    return %c0_i32, %c0_i32_0 : i32, i32
  }
  func.func @transform_3(%arg0: i32) -> (i32, i32) {
    %c0_i32 = arith.constant 0 : i32
    %c0_i32_0 = arith.constant 0 : i32
    %c0_i32_1 = arith.constant 0 : i32
    return %c0_i32, %c0_i32_0 : i32, i32
  }
  func.func @transform_4(%arg0: i32) -> (i32, i32) {
    %c0_i32 = arith.constant 0 : i32
    %c0_i32_0 = arith.constant 0 : i32
    %c0_i32_1 = arith.constant 0 : i32
    return %c0_i32, %c0_i32_0 : i32, i32
  }
  func.func @transform_5(%arg0: i32) -> (i32, i32) {
    %c0_i32 = arith.constant 0 : i32
    %c0_i32_0 = arith.constant 0 : i32
    %c0_i32_1 = arith.constant 0 : i32
    return %c0_i32, %c0_i32_0 : i32, i32
  }
  func.func @transform_6(%arg0: i32) -> (i32, i32) {
    %c0_i32 = arith.constant 0 : i32
    %c0_i32_0 = arith.constant 0 : i32
    %c0_i32_1 = arith.constant 0 : i32
    return %c0_i32, %c0_i32_0 : i32, i32
  }
  func.func @transform_7(%arg0: i32) -> (i32, i32) {
    %c0_i32 = arith.constant 0 : i32
    %c0_i32_0 = arith.constant 0 : i32
    return %arg0, %c0_i32 : i32, i32
  }
}

</mosaic_0001>

<llo_original>
// kernel: tpu_custom_call.1
$region0: #{tpu_custom_call.1}
  #allocation0 [shape = 'u32[]', space=smem, size = 0x4, offset = 0x4, fixed_abs, tag = 'smem constant byte address 0x4 - core index']
  #allocation1 [shape = 'u32[144,128]{1,0:T(1,128)}', space=vmem, size = 0x12000, scoped, tag = 'internal scratch']
  %s0 = inlined_call_operand.hbm [shape: f32[2,16], index: 0, kind: input, shape index: {}]
  %s1 = inlined_call_operand.hbm [shape: f32[16,32], index: 1, kind: input, shape index: {}]
  %s2 = inlined_call_operand.hbm [shape: f32[1,32], index: 2, kind: input, shape index: {}]
  %s3 = inlined_call_operand.hbm [shape: f32[32,32], index: 3, kind: input, shape index: {}]
  %s4 = inlined_call_operand.hbm [shape: f32[1,32], index: 4, kind: input, shape index: {}]
  %s5 = inlined_call_operand.hbm [shape: f32[32,4], index: 5, kind: input, shape index: {}]
  %s6 = inlined_call_operand.hbm [shape: f32[1,4], index: 6, kind: input, shape index: {}]
  %s7 = inlined_call_operand.hbm [shape: f32[2,4], index: 7, kind: output, shape index: {}]
  %s8 = sld [smem:[#allocation0]]
  $region66: #{tpu_custom_call.1} parent=0
    _
  %s10 = ssub.s32 1, %s8
  %s11 = scalar_select 0, %s10, %s8
  $region1: #{tpu_custom_call.1} parent=0
    #allocation2 [shape = 'u8[1024]{0}', space=vmem, size = 0x400, scoped, tag = 'input window, operand 0, single buffered']
    #allocation3 [shape = 's32[1]{0}', space=sflag, size = 0x4, scoped, tag = 'scoped memory for tpu_custom_call.1']
    #allocation4 [shape = 's32[1]{0}', space=sflag, size = 0x4, scoped, tag = 'scoped memory for tpu_custom_call.1']
    #allocation5 [shape = 'u8[8192]{0}', space=vmem, size = 0x2000, scoped, tag = 'input window, operand 1, single buffered']
    #allocation6 [shape = 's32[1]{0}', space=sflag, size = 0x4, scoped, tag = 'scoped memory for tpu_custom_call.1']
    #allocation7 [shape = 'u8[512]{0}', space=vmem, size = 0x400, scoped, tag = 'input window, operand 2, single buffered']
    #allocation8 [shape = 'u8[16384]{0}', space=vmem, size = 0x4000, scoped, tag = 'input window, operand 3, single buffered']
    #allocation9 [shape = 's32[1]{0}', space=sflag, size = 0x4, scoped, tag = 'scoped memory for tpu_custom_call.1']
    #allocation10 [shape = 'u8[512]{0}', space=vmem, size = 0x400, scoped, tag = 'input window, operand 4, single buffered']
    #allocation11 [shape = 'u8[16384]{0}', space=vmem, size = 0x4000, scoped, tag = 'input window, operand 5, single buffered']
    #allocation12 [shape = 's32[1]{0}', space=sflag, size = 0x4, scoped, tag = 'scoped memory for tpu_custom_call.1']
    #allocation13 [shape = 'u8[512]{0}', space=vmem, size = 0x400, scoped, tag = 'input window, operand 6, single buffered']
    #allocation14 [shape = 'u8[1024]{0}', space=vmem, size = 0x400, scoped, tag = 'output window, operand 0, single buffered']
    %12 = vsyncpa [#allocation3], 0
    %13 = vsyncpa [#allocation6], 0
    %14 = vsyncpa [#allocation9], 0
    %15 = vsyncpa [#allocation12], 0
    %16 = vsyncpa [#allocation4], 0
    // Predicated region
    $region2: #{tpu_custom_call.1} parent=1 // pred_check
      _
    $region3: #{tpu_custom_call.1} parent=1 // pred_check_branch
      %18 = sbr.rel (0) target = $region5
    $region4: #{tpu_custom_call.1} parent=1 // pred_region
      %s20 = ssub.s32 32, 32
      %21 = vsyncadd [#allocation3], %s20
      %s23 = sshll.u32 [#allocation2], 4
      %s24 = int_to_ptr.vmem [resolvable:$true] %s23
      %26 = dma.hbm_to_vmem [thread:$0]  %s0, 32, %s24, [#allocation3]
    $region5: #{tpu_custom_call.1} parent=1 // pred_fallthru
      _
    // Predicated region
    $region6: #{tpu_custom_call.1} parent=1 // pred_check
      _
    $region7: #{tpu_custom_call.1} parent=1 // pred_check_branch
      %28 = sbr.rel (0) target = $region9
    $region8: #{tpu_custom_call.1} parent=1 // pred_region
      %s30 = ssub.s32 256, 256
      %31 = vsyncadd [#allocation6], %s30
      %s32 = sshll.u32 [#allocation5], 4
      %s33 = int_to_ptr.vmem [resolvable:$true] %s32
      %38 = dma.hbm_to_vmem [thread:$0]  %s1, 256, %s33, [#allocation6], 128, 128, 8
    $region9: #{tpu_custom_call.1} parent=1 // pred_fallthru
      _
    // Predicated region
    $region10: #{tpu_custom_call.1} parent=1 // pred_check
      _
    $region11: #{tpu_custom_call.1} parent=1 // pred_check_branch
      %40 = sbr.rel (0) target = $region13
    $region12: #{tpu_custom_call.1} parent=1 // pred_region
      %s42 = ssub.s32 16, 16
      %43 = vsyncadd [#allocation6], %s42
      %s45 = sshll.u32 [#allocation7], 4
      %s46 = int_to_ptr.vmem [resolvable:$true] %s45
      %48 = dma.hbm_to_vmem [thread:$0]  %s2, 16, %s46, [#allocation6]
    $region13: #{tpu_custom_call.1} parent=1 // pred_fallthru
      _
    // Predicated region
    $region14: #{tpu_custom_call.1} parent=1 // pred_check
      _
    $region15: #{tpu_custom_call.1} parent=1 // pred_check_branch
      %50 = sbr.rel (0) target = $region17
    $region16: #{tpu_custom_call.1} parent=1 // pred_region
      %s52 = ssub.s32 512, 512
      %53 = vsyncadd [#allocation9], %s52
      %s54 = sshll.u32 [#allocation8], 4
      %s55 = int_to_ptr.vmem [resolvable:$true] %s54
      %60 = dma.hbm_to_vmem [thread:$0]  %s3, 512, %s55, [#allocation9], 128, 128, 8
    $region17: #{tpu_custom_call.1} parent=1 // pred_fallthru
      _
    // Predicated region
    $region18: #{tpu_custom_call.1} parent=1 // pred_check
      _
    $region19: #{tpu_custom_call.1} parent=1 // pred_check_branch
      %62 = sbr.rel (0) target = $region21
    $region20: #{tpu_custom_call.1} parent=1 // pred_region
      %s64 = ssub.s32 16, 16
      %65 = vsyncadd [#allocation9], %s64
      %s67 = sshll.u32 [#allocation10], 4
      %s68 = int_to_ptr.vmem [resolvable:$true] %s67
      %70 = dma.hbm_to_vmem [thread:$0]  %s4, 16, %s68, [#allocation9]
    $region21: #{tpu_custom_call.1} parent=1 // pred_fallthru
      _
    // Predicated region
    $region22: #{tpu_custom_call.1} parent=1 // pred_check
      _
    $region23: #{tpu_custom_call.1} parent=1 // pred_check_branch
      %72 = sbr.rel (0) target = $region25
    $region24: #{tpu_custom_call.1} parent=1 // pred_region
      %s74 = ssub.s32 512, 512
      %75 = vsyncadd [#allocation12], %s74
      %s76 = sshll.u32 [#allocation11], 4
      %s77 = int_to_ptr.vmem [resolvable:$true] %s76
      %82 = dma.hbm_to_vmem [thread:$0]  %s5, 512, %s77, [#allocation12], 128, 128, 8
    $region25: #{tpu_custom_call.1} parent=1 // pred_fallthru
      _
    // Predicated region
    $region26: #{tpu_custom_call.1} parent=1 // pred_check
      _
    $region27: #{tpu_custom_call.1} parent=1 // pred_check_branch
      %84 = sbr.rel (0) target = $region29
    $region28: #{tpu_custom_call.1} parent=1 // pred_region
      %s86 = ssub.s32 16, 16
      %87 = vsyncadd [#allocation12], %s86
      %s89 = sshll.u32 [#allocation13], 4
      %s90 = int_to_ptr.vmem [resolvable:$true] %s89
      %92 = dma.hbm_to_vmem [thread:$0]  %s6, 16, %s90, [#allocation12]
    $region29: #{tpu_custom_call.1} parent=1 // pred_fallthru
      _
    // Predicated region
    $region30: #{tpu_custom_call.1} parent=1 // pred_check
      _
    $region31: #{tpu_custom_call.1} parent=1 // pred_check_branch
      %94 = sbr.rel (0) target = $region33
    $region32: #{tpu_custom_call.1} parent=1 // pred_region
      %95 = dma.done [#allocation3], 32
    $region33: #{tpu_custom_call.1} parent=1 // pred_fallthru
      _
    // Predicated region
    $region34: #{tpu_custom_call.1} parent=1 // pred_check
      _
    $region35: #{tpu_custom_call.1} parent=1 // pred_check_branch
      %97 = sbr.rel (0) target = $region37
    $region36: #{tpu_custom_call.1} parent=1 // pred_region
      %98 = dma.done [#allocation6], 256
    $region37: #{tpu_custom_call.1} parent=1 // pred_fallthru
      _
    // Predicated region
    $region38: #{tpu_custom_call.1} parent=1 // pred_check
      _
    $region39: #{tpu_custom_call.1} parent=1 // pred_check_branch
      %100 = sbr.rel (0) target = $region41
    $region40: #{tpu_custom_call.1} parent=1 // pred_region
      %101 = dma.done [#allocation6], 16
    $region41: #{tpu_custom_call.1} parent=1 // pred_fallthru
      _
    // Predicated region
    $region42: #{tpu_custom_call.1} parent=1 // pred_check
      _
    $region43: #{tpu_custom_call.1} parent=1 // pred_check_branch
      %103 = sbr.rel (0) target = $region45
    $region44: #{tpu_custom_call.1} parent=1 // pred_region
      %104 = dma.done [#allocation9], 512
    $region45: #{tpu_custom_call.1} parent=1 // pred_fallthru
      _
    // Predicated region
    $region46: #{tpu_custom_call.1} parent=1 // pred_check
      _
    $region47: #{tpu_custom_call.1} parent=1 // pred_check_branch
      %106 = sbr.rel (0) target = $region49
    $region48: #{tpu_custom_call.1} parent=1 // pred_region
      %107 = dma.done [#allocation9], 16
    $region49: #{tpu_custom_call.1} parent=1 // pred_fallthru
      _
    // Predicated region
    $region50: #{tpu_custom_call.1} parent=1 // pred_check
      _
    $region51: #{tpu_custom_call.1} parent=1 // pred_check_branch
      %109 = sbr.rel (0) target = $region53
    $region52: #{tpu_custom_call.1} parent=1 // pred_region
      %110 = dma.done [#allocation12], 512
    $region53: #{tpu_custom_call.1} parent=1 // pred_fallthru
      _
    // Predicated region
    $region54: #{tpu_custom_call.1} parent=1 // pred_check
      _
    $region55: #{tpu_custom_call.1} parent=1 // pred_check_branch
      %112 = sbr.rel (0) target = $region57
    $region56: #{tpu_custom_call.1} parent=1 // pred_region
      %113 = dma.done [#allocation12], 16
    $region57: #{tpu_custom_call.1} parent=1 // pred_fallthru
      _
    %v114 = vld [vmem:[#allocation2] sm:$0x3]
    %v115 = vld [vmem:[#allocation5] sm:$0xff]
    %v116 = vld [vmem:[#allocation5 + $0x8] sm:$0xff]
    %v117 = vld [vmem:[#allocation7] sm:$0x1]
    %v119 = vlaneseq
    %v120 = vshrl.u32 %v119, 7
    %v121 = vsub.s32 0, %v120
    %v122 = vrot.slane %v117, %v121
    %vm124 = vcmask 130048
    %v126 = vsel %vm124, %v114, 0
    %128 = vmatprep.subr.mxu0 0.0
    %129 = vmatpush1.msra.mxu0 %v115
    %130 = vmatprep.subr.mxu0 0.0
    %131 = vmatpush1.msra.mxu0 %v116
    %132 = vmatprep.subr.mxu0 0.0
    %133 = vmatpush1.msra.mxu0 0.0
    %134 = vmatprep.subr.mxu0 0.0
    %135 = vmatpush1.msra.mxu0 0.0
    %136 = vmatprep.subr.mxu0 0.0
    %137 = vmatpush1.msra.mxu0 0.0
    %138 = vmatprep.subr.mxu0 0.0
    %139 = vmatpush1.msra.mxu0 0.0
    %140 = vmatprep.subr.mxu0 0.0
    %141 = vmatpush1.msra.mxu0 0.0
    %142 = vmatprep.subr.mxu0 0.0
    %143 = vmatpush1.msra.mxu0 0.0
    %144 = vmatprep.subr.mxu0 0.0
    %145 = vmatpush1.msra.mxu0 0.0
    %146 = vmatprep.subr.mxu0 0.0
    %147 = vmatpush1.msra.mxu0 0.0
    %148 = vmatprep.subr.mxu0 0.0
    %149 = vmatpush1.msra.mxu0 0.0
    %150 = vmatprep.subr.mxu0 0.0
    %151 = vmatpush1.msra.mxu0 0.0
    %152 = vmatprep.subr.mxu0 0.0
    %153 = vmatpush1.msra.mxu0 0.0
    %154 = vmatprep.subr.mxu0 0.0
    %155 = vmatpush1.msra.mxu0 0.0
    %156 = vmatprep.subr.mxu0 0.0
    %157 = vmatpush1.msra.mxu0 0.0
    %158 = vmatprep.subr.mxu0 0.0
    %159 = vmatpush1.msra.mxu0 0.0
    %160 = vmatprep.subr.mxu0 0.0
    %161 = vmatpush1.msra.mxu0 0.0
    %162 = vmatprep.subr.mxu0 0.0
    %163 = vmatpush1.msra.mxu0 0.0
    %164 = vmatprep.subr.mxu0 0.0
    %165 = vmatpush1.msra.mxu0 0.0
    %166 = vmatprep.subr.mxu0 0.0
    %167 = vmatpush1.msra.mxu0 0.0
    %168 = vmatprep.subr.mxu0 0.0
    %169 = vmatpush1.msra.mxu0 0.0
    %170 = vmatprep.subr.mxu0 0.0
    %171 = vmatpush1.msra.mxu0 0.0
    %172 = vmatprep.subr.mxu0 0.0
    %173 = vmatpush1.msra.mxu0 0.0
    %174 = vmatprep.subr.mxu0 0.0
    %175 = vmatpush1.msra.mxu0 0.0
    %176 = vmatprep.subr.mxu0 0.0
    %177 = vmatpush1.msra.mxu0 0.0
    %178 = vmatprep.subr.mxu0 0.0
    %179 = vmatpush1.msra.mxu0 0.0
    %180 = vmatprep.subr.mxu0 0.0
    %181 = vmatpush1.msra.mxu0 0.0
    %182 = vmatprep.subr.mxu0 0.0
    %183 = vmatpush1.msra.mxu0 0.0
    %184 = vmatprep.subr.mxu0 0.0
    %185 = vmatpush1.msra.mxu0 0.0
    %186 = vmatprep.subr.mxu0 0.0
    %187 = vmatpush1.msra.mxu0 0.0
    %188 = vmatprep.subr.mxu0 0.0
    %189 = vmatpush1.msra.mxu0 0.0
    %190 = vmatprep.subr.mxu0 0.0
    %191 = vmatpush1.msra.mxu0 0.0
    %192 = vmatprep.mubr.f32.mxu0 0.0
    %193 = vmatmul.mubr.f32.gmra.mrb[0].mxu0 %v126
    %v194 = vpop.f32.mrb[0].mxu0
    %v195 = vadd.f32 %v122, %v194
    %v196 = vpop.f32.mrb[0].mxu0
    %197 = vdwg.mxu0
    %v198 = vtanh.pop %v195
    %v199 = vld [vmem:[#allocation8] sm:$0xff]
    %v200 = vld [vmem:[#allocation8 + $0x8] sm:$0xff]
    %v201 = vld [vmem:[#allocation8 + $0x10] sm:$0xff]
    %v202 = vld [vmem:[#allocation8 + $0x18] sm:$0xff]
    %v203 = vld [vmem:[#allocation10] sm:$0x1]
    %v205 = vlaneseq
    %v206 = vshrl.u32 %v205, 7
    %v207 = vsub.s32 0, %v206
    %v208 = vrot.slane %v203, %v207
    %vm210 = vcmask 261120
    %v212 = vsel %vm210, %v198, 0
    %214 = vmatprep.subr.mxu0 0.0
    %215 = vmatpush1.msra.mxu0 %v199
    %216 = vmatprep.subr.mxu0 0.0
    %217 = vmatpush1.msra.mxu0 %v200
    %218 = vmatprep.subr.mxu0 0.0
    %219 = vmatpush1.msra.mxu0 %v201
    %220 = vmatprep.subr.mxu0 0.0
    %221 = vmatpush1.msra.mxu0 %v202
    %222 = vmatprep.subr.mxu0 0.0
    %223 = vmatpush1.msra.mxu0 0.0
    %224 = vmatprep.subr.mxu0 0.0
    %225 = vmatpush1.msra.mxu0 0.0
    %226 = vmatprep.subr.mxu0 0.0
    %227 = vmatpush1.msra.mxu0 0.0
    %228 = vmatprep.subr.mxu0 0.0
    %229 = vmatpush1.msra.mxu0 0.0
    %230 = vmatprep.subr.mxu0 0.0
    %231 = vmatpush1.msra.mxu0 0.0
    %232 = vmatprep.subr.mxu0 0.0
    %233 = vmatpush1.msra.mxu0 0.0
    %234 = vmatprep.subr.mxu0 0.0
    %235 = vmatpush1.msra.mxu0 0.0
    %236 = vmatprep.subr.mxu0 0.0
    %237 = vmatpush1.msra.mxu0 0.0
    %238 = vmatprep.subr.mxu0 0.0
    %239 = vmatpush1.msra.mxu0 0.0
    %240 = vmatprep.subr.mxu0 0.0
    %241 = vmatpush1.msra.mxu0 0.0
    %242 = vmatprep.subr.mxu0 0.0
    %243 = vmatpush1.msra.mxu0 0.0
    %244 = vmatprep.subr.mxu0 0.0
    %245 = vmatpush1.msra.mxu0 0.0
    %246 = vmatprep.subr.mxu0 0.0
    %247 = vmatpush1.msra.mxu0 0.0
    %248 = vmatprep.subr.mxu0 0.0
    %249 = vmatpush1.msra.mxu0 0.0
    %250 = vmatprep.subr.mxu0 0.0
    %251 = vmatpush1.msra.mxu0 0.0
    %252 = vmatprep.subr.mxu0 0.0
    %253 = vmatpush1.msra.mxu0 0.0
    %254 = vmatprep.subr.mxu0 0.0
    %255 = vmatpush1.msra.mxu0 0.0
    %256 = vmatprep.subr.mxu0 0.0
    %257 = vmatpush1.msra.mxu0 0.0
    %258 = vmatprep.subr.mxu0 0.0
    %259 = vmatpush1.msra.mxu0 0.0
    %260 = vmatprep.subr.mxu0 0.0
    %261 = vmatpush1.msra.mxu0 0.0
    %262 = vmatprep.subr.mxu0 0.0
    %263 = vmatpush1.msra.mxu0 0.0
    %264 = vmatprep.subr.mxu0 0.0
    %265 = vmatpush1.msra.mxu0 0.0
    %266 = vmatprep.subr.mxu0 0.0
    %267 = vmatpush1.msra.mxu0 0.0
    %268 = vmatprep.subr.mxu0 0.0
    %269 = vmatpush1.msra.mxu0 0.0
    %270 = vmatprep.subr.mxu0 0.0
    %271 = vmatpush1.msra.mxu0 0.0
    %272 = vmatprep.subr.mxu0 0.0
    %273 = vmatpush1.msra.mxu0 0.0
    %274 = vmatprep.subr.mxu0 0.0
    %275 = vmatpush1.msra.mxu0 0.0
    %276 = vmatprep.subr.mxu0 0.0
    %277 = vmatpush1.msra.mxu0 0.0
    %278 = vmatprep.mubr.f32.mxu0 0.0
    %279 = vmatmul.mubr.f32.gmra.mrb[0].mxu0 %v212
    %v280 = vpop.f32.mrb[0].mxu0
    %v281 = vadd.f32 %v208, %v280
    %v282 = vpop.f32.mrb[0].mxu0
    %283 = vdwg.mxu0
    %v284 = vtanh.pop %v281
    %v285 = vld [vmem:[#allocation11] sm:$0xff]
    %v286 = vld [vmem:[#allocation11 + $0x8] sm:$0xff]
    %v287 = vld [vmem:[#allocation11 + $0x10] sm:$0xff]
    %v288 = vld [vmem:[#allocation11 + $0x18] sm:$0xff]
    %v289 = vld [vmem:[#allocation13] sm:$0x1]
    %v291 = vlaneseq
    %v292 = vshrl.u32 %v291, 7
    %v293 = vsub.s32 0, %v292
    %v294 = vrot.slane %v289, %v293
    %v297 = vsel %vm210, %v284, 0
    %299 = vmatprep.subr.mxu0 0.0
    %300 = vmatpush1.msra.mxu0 %v285
    %301 = vmatprep.subr.mxu0 0.0
    %302 = vmatpush1.msra.mxu0 %v286
    %303 = vmatprep.subr.mxu0 0.0
    %304 = vmatpush1.msra.mxu0 %v287
    %305 = vmatprep.subr.mxu0 0.0
    %306 = vmatpush1.msra.mxu0 %v288
    %307 = vmatprep.subr.mxu0 0.0
    %308 = vmatpush1.msra.mxu0 0.0
    %309 = vmatprep.subr.mxu0 0.0
    %310 = vmatpush1.msra.mxu0 0.0
    %311 = vmatprep.subr.mxu0 0.0
    %312 = vmatpush1.msra.mxu0 0.0
    %313 = vmatprep.subr.mxu0 0.0
    %314 = vmatpush1.msra.mxu0 0.0
    %315 = vmatprep.subr.mxu0 0.0
    %316 = vmatpush1.msra.mxu0 0.0
    %317 = vmatprep.subr.mxu0 0.0
    %318 = vmatpush1.msra.mxu0 0.0
    %319 = vmatprep.subr.mxu0 0.0
    %320 = vmatpush1.msra.mxu0 0.0
    %321 = vmatprep.subr.mxu0 0.0
    %322 = vmatpush1.msra.mxu0 0.0
    %323 = vmatprep.subr.mxu0 0.0
    %324 = vmatpush1.msra.mxu0 0.0
    %325 = vmatprep.subr.mxu0 0.0
    %326 = vmatpush1.msra.mxu0 0.0
    %327 = vmatprep.subr.mxu0 0.0
    %328 = vmatpush1.msra.mxu0 0.0
    %329 = vmatprep.subr.mxu0 0.0
    %330 = vmatpush1.msra.mxu0 0.0
    %331 = vmatprep.subr.mxu0 0.0
    %332 = vmatpush1.msra.mxu0 0.0
    %333 = vmatprep.subr.mxu0 0.0
    %334 = vmatpush1.msra.mxu0 0.0
    %335 = vmatprep.subr.mxu0 0.0
    %336 = vmatpush1.msra.mxu0 0.0
    %337 = vmatprep.subr.mxu0 0.0
    %338 = vmatpush1.msra.mxu0 0.0
    %339 = vmatprep.subr.mxu0 0.0
    %340 = vmatpush1.msra.mxu0 0.0
    %341 = vmatprep.subr.mxu0 0.0
    %342 = vmatpush1.msra.mxu0 0.0
    %343 = vmatprep.subr.mxu0 0.0
    %344 = vmatpush1.msra.mxu0 0.0
    %345 = vmatprep.subr.mxu0 0.0
    %346 = vmatpush1.msra.mxu0 0.0
    %347 = vmatprep.subr.mxu0 0.0
    %348 = vmatpush1.msra.mxu0 0.0
    %349 = vmatprep.subr.mxu0 0.0
    %350 = vmatpush1.msra.mxu0 0.0
    %351 = vmatprep.subr.mxu0 0.0
    %352 = vmatpush1.msra.mxu0 0.0
    %353 = vmatprep.subr.mxu0 0.0
    %354 = vmatpush1.msra.mxu0 0.0
    %355 = vmatprep.subr.mxu0 0.0
    %356 = vmatpush1.msra.mxu0 0.0
    %357 = vmatprep.subr.mxu0 0.0
    %358 = vmatpush1.msra.mxu0 0.0
    %359 = vmatprep.subr.mxu0 0.0
    %360 = vmatpush1.msra.mxu0 0.0
    %361 = vmatprep.subr.mxu0 0.0
    %362 = vmatpush1.msra.mxu0 0.0
    %363 = vmatprep.mubr.f32.mxu0 0.0
    %364 = vmatmul.mubr.f32.gmra.mrb[0].mxu0 %v297
    %v365 = vpop.f32.mrb[0].mxu0
    %v366 = vadd.f32 %v294, %v365
    %v367 = vpop.f32.mrb[0].mxu0
    %368 = vdwg.mxu0
    %vm369 = vcmask 25600
    %370 = vst.msk [vmem:[#allocation14] sm:$0x3] %vm369, %v366
    // Predicated region
    $region58: #{tpu_custom_call.1} parent=1 // pred_check
      _
    $region59: #{tpu_custom_call.1} parent=1 // pred_check_branch
      %372 = sbr.rel (0) target = $region61
    $region60: #{tpu_custom_call.1} parent=1 // pred_region
      %s374 = ssub.s32 32, 32
      %375 = vsyncadd [#allocation4], %s374
      %s377 = sshll.u32 [#allocation14], 4
      %s378 = int_to_ptr.vmem [resolvable:$true] %s377
      %380 = dma.vmem_to_hbm [thread:$0]  %s378, 32, %s7, [#allocation4]
    $region61: #{tpu_custom_call.1} parent=1 // pred_fallthru
      _
    // Predicated region
    $region62: #{tpu_custom_call.1} parent=1 // pred_check
      _
    $region63: #{tpu_custom_call.1} parent=1 // pred_check_branch
      %382 = sbr.rel (0) target = $region65
    $region64: #{tpu_custom_call.1} parent=1 // pred_region
      %383 = dma.done [#allocation4], 32
    $region65: #{tpu_custom_call.1} parent=1 // pred_fallthru
      _
    %384 = vsyncpa [#allocation3], 1
    %385 = vsyncpa [#allocation6], 1
    %386 = vsyncpa [#allocation9], 1
    %387 = vsyncpa [#allocation12], 1
    %388 = vsyncpa [#allocation4], 1

</llo_original>
